<compile_context>
chip_gen: v7x
topology: tpu7x:2x2x1
jax: 0.10.0
libtpu: 0.0.40
codegen_flags: <defaults>
</compile_context>

<pallas_src>
import math

import jax
import jax.numpy as jnp
from jax.experimental import pallas as pl
from jax.experimental.pallas import tpu as pltpu

_MIB = 1024 * 1024
_GROUP = 8  # rows gathered per inner step == sublanes of one f32 vreg tile


def _round_up(x: int, m: int) -> int:
    return ((x + m - 1) // m) * m


def _tpu_vmem_capacity_bytes() -> int:
    """Physical VMEM per TensorCore; conservative fallback if the query fails."""
    try:
        cap = int(pltpu.get_tpu_info().vmem_capacity_bytes)
        if cap > 0:
            return cap
    except Exception:
        pass
    return 64 * _MIB  # v7x per-core size: the most conservative real value


_VMEM_CAP_BYTES = _tpu_vmem_capacity_bytes()
_BIG_VMEM = _VMEM_CAP_BYTES >= 96 * _MIB            # v5e / v6e (128 MiB)
# Table is kept VMEM-resident below this size.  The constant-index BlockSpec is
# fetched from HBM only once, but the pipeline still double-buffers it, hence
# the 2x factor in the budgets below.
# TODO(synk): single-buffer the constant-index table via pipeline_mode=pl.Buffered(1)
# once universally supported; that would double these resident thresholds.
_RESIDENT_TABLE_MAX_BYTES = (40 * _MIB) if _BIG_VMEM else (18 * _MIB)
_OUT_BUFFER_BYTES_CAP = (8 * _MIB) if _BIG_VMEM else (4 * _MIB)
_DEFAULT_TOKENS_PER_TILE = 512 if _BIG_VMEM else 256
_VMEM_LIMIT_CAP = (100 * _MIB) if _BIG_VMEM else (56 * _MIB)


def _choose_tile_tokens(n_tok: int, d_model: int, itemsize: int,
                        requested=None) -> int:
    """Tokens per grid step: multiple of 8 (full-sublane stores), VMEM-bounded."""
    if requested is None:
        requested = _DEFAULT_TOKENS_PER_TILE
    cap = max(_GROUP,
              (_OUT_BUFFER_BYTES_CAP // max(1, d_model * itemsize)) // _GROUP * _GROUP)
    t = min(int(requested), cap, _round_up(max(n_tok, 1), _GROUP))
    return max(_GROUP, (t // _GROUP) * _GROUP)


def _vmem_limit_bytes(needed: int) -> int:
    # Explicit scoped-VMEM budget with headroom, capped per chip generation
    # (per-core budget on v7x since the token axis shards across 2 TCs).
    return int(min(max(needed + 4 * _MIB, 16 * _MIB), _VMEM_LIMIT_CAP))


# ---------------------------------------------------------------------------
# Path 1: table fits in VMEM -> keep it resident, direct dynamic-row gather.
# ---------------------------------------------------------------------------
def _make_resident_kernel(scale: float):
    def kernel(ids_ref, table_ref, out_ref):
        # ids_ref  : SMEM (n_pad,) int32 -- all token ids (scalar-prefetched)
        # table_ref: VMEM (V, D)         -- whole table; constant block index =>
        #                                   DMA'd from HBM once and reused
        # out_ref  : VMEM (T, D)
        t_tok, _ = out_ref.shape
        base = pl.program_id(0) * t_tok

        def body(g, carry):
            off = pl.multiple_of(g * _GROUP, _GROUP)
            # Gather 8 rows by dynamic sublane slice, write one unmasked (8, D)
            # block (no per-token masked stores, no one-hot / MXU work).
            rows = [table_ref[pl.ds(ids_ref[base + off + r], 1), :]
                    for r in range(_GROUP)]
            blk = jnp.concatenate(rows, axis=0)                    # (8, D)
            out_ref[pl.ds(off, _GROUP), :] = (blk * scale).astype(out_ref.dtype)
            return carry

        jax.lax.fori_loop(0, t_tok // _GROUP, body, 0)

    return kernel


def _embed_resident(flat_ids, table, tile_tokens, scale):
    n_pad = flat_ids.shape[0]
    n_tiles = n_pad // tile_tokens
    vocab, d_model = table.shape
    itemsize = table.dtype.itemsize

    needed = (2 * vocab * d_model * itemsize            # table block (double-buffered)
              + 2 * tile_tokens * d_model * itemsize)   # output tile (double-buffered)

    grid_spec = pltpu.PrefetchScalarGridSpec(
        num_scalar_prefetch=1,                           # flat token ids -> SMEM
        grid=(n_tiles,),
        in_specs=[pl.BlockSpec((vocab, d_model), lambda i, ids: (0, 0))],
        out_specs=pl.BlockSpec((tile_tokens, d_model), lambda i, ids: (i, 0)),
    )
    return pl.pallas_call(
        _make_resident_kernel(scale),
        out_shape=jax.ShapeDtypeStruct((n_pad, d_model), table.dtype),
        grid_spec=grid_spec,
        compiler_params=pltpu.CompilerParams(
            dimension_semantics=("parallel",),
            vmem_limit_bytes=_vmem_limit_bytes(needed),
        ),
    )(flat_ids, table)


# ---------------------------------------------------------------------------
# Path 2: table too big for VMEM -> per-row HBM DMAs straight into the output
# tile, all rows of the tile in flight before draining (latency-bound gather).
# ---------------------------------------------------------------------------
def _make_hbm_gather_kernel(scale: float):
    def kernel(ids_ref, table_hbm, out_ref, sems):
        # ids_ref  : SMEM (n_pad,) int32 -- all token ids (scalar-prefetched)
        # table_hbm: HBM  (V, D)         -- full table, never auto-DMA'd
        # out_ref  : VMEM (T, D)         -- rows land here directly via DMA
        # sems     : DMA semaphores (1,) -- one shared counting semaphore
        t_tok, _ = out_ref.shape
        base = pl.program_id(0) * t_tok

        def row_copy(tok):
            row = ids_ref[base + tok]
            return pltpu.make_async_copy(table_hbm.at[pl.ds(row, 1), :],
                                         out_ref.at[pl.ds(tok, 1), :],
                                         sems.at[0])

        # Issue every row DMA of the tile before waiting: keeps the DMA engine
        # fully subscribed instead of an 8-row ring (~16 KiB in flight).
        def issue(tok, carry):
            row_copy(tok).start()
            return carry
        jax.lax.fori_loop(0, t_tok, issue, 0, unroll=_GROUP)

        # Drain: every copy is one row, so each wait decrements the shared
        # semaphore by exactly one row's bytes; descriptors are rebuilt from the
        # same id/slot that started them (no dummy-descriptor wait).
        def drain(tok, carry):
            row_copy(tok).wait()
            return carry
        jax.lax.fori_loop(0, t_tok, drain, 0, unroll=_GROUP)

        # Apply sqrt(d_model) once on the full tile: full-vreg mul + unmasked stores.
        out_ref[...] = (out_ref[...] * scale).astype(out_ref.dtype)

    return kernel


def _embed_hbm_gather(flat_ids, table, tile_tokens, scale):
    n_pad = flat_ids.shape[0]
    n_tiles = n_pad // tile_tokens
    vocab, d_model = table.shape
    itemsize = table.dtype.itemsize

    needed = 2 * tile_tokens * d_model * itemsize        # output tile (double-buffered)

    grid_spec = pltpu.PrefetchScalarGridSpec(
        num_scalar_prefetch=1,
        grid=(n_tiles,),
        in_specs=[pl.BlockSpec(memory_space=pl.ANY)],     # table stays in HBM
        out_specs=pl.BlockSpec((tile_tokens, d_model), lambda i, ids: (i, 0)),
        scratch_shapes=[pltpu.SemaphoreType.DMA((1,))],
    )
    return pl.pallas_call(
        _make_hbm_gather_kernel(scale),
        out_shape=jax.ShapeDtypeStruct((n_pad, d_model), table.dtype),
        grid_spec=grid_spec,
        compiler_params=pltpu.CompilerParams(
            dimension_semantics=("parallel",),
            vmem_limit_bytes=_vmem_limit_bytes(needed),
        ),
    )(flat_ids, table)


# ---------------------------------------------------------------------------
# Public wrapper (matches the PyTorch module's forward: table[x] * sqrt(D)).
# ---------------------------------------------------------------------------
def pallas_embedding(ids: jax.Array, table: jax.Array, *,
                     tokens_per_tile=None, force_path=None) -> jax.Array:
    """ids: integer tokens (any shape); table: [V, D]. Returns ids.shape + (D,)."""
    vocab, d_model = table.shape
    scale = math.sqrt(d_model)

    flat_ids = ids.reshape(-1).astype(jnp.int32)
    # nn.Embedding raises on out-of-range ids; clamp so a bad id can never turn
    # into an out-of-bounds table access / DMA inside the kernel.
    flat_ids = jnp.clip(flat_ids, 0, vocab - 1)
    n_tok = flat_ids.shape[0]

    tile_tokens = _choose_tile_tokens(n_tok, d_model, table.dtype.itemsize,
                                      tokens_per_tile)
    n_pad = _round_up(n_tok, tile_tokens)
    if n_pad != n_tok:
        flat_ids = jnp.pad(flat_ids, (0, n_pad - n_tok))  # pad tokens gather row 0

    table_bytes = vocab * d_model * table.dtype.itemsize
    use_resident = (force_path == "resident" or
                    (force_path is None and table_bytes <= _RESIDENT_TABLE_MAX_BYTES))
    if use_resident:
        out_flat = _embed_resident(flat_ids, table, tile_tokens, scale)
    else:
        out_flat = _embed_hbm_gather(flat_ids, table, tile_tokens, scale)

    return out_flat[:n_tok].reshape(*ids.shape, d_model)


if __name__ == "__main__":
    key = jax.random.PRNGKey(0)
    k_tab1, k_ids1, k_tab2, k_ids2 = jax.random.split(key, 4)

    d_model, batch = 128, 2

    # Config 1: small shapes matching the module (VMEM-resident gather path).
    vocab1, seq1 = 64, 8
    table1 = jax.random.normal(k_tab1, (vocab1, d_model), dtype=jnp.float32)
    ids1 = jax.random.randint(k_ids1, (batch, seq1), 0, vocab1, dtype=jnp.int32)
    out1 = jax.block_until_ready(pallas_embedding(ids1, table1))
    ref1 = table1[ids1] * math.sqrt(d_model)
    assert out1.shape == (batch, seq1, d_model)
    assert jnp.allclose(out1, ref1, atol=1e-5, rtol=1e-5), float(
        jnp.max(jnp.abs(out1 - ref1)))

    # Config 2: multi-tile resident path, uneven n_tok exercises tail padding.
    vocab2, seq2 = 2048, 300
    table2 = jax.random.normal(k_tab2, (vocab2, d_model), dtype=jnp.float32)
    ids2 = jax.random.randint(k_ids2, (batch, seq2), 0, vocab2, dtype=jnp.int32)
    out2 = jax.block_until_ready(pallas_embedding(ids2, table2))
    ref2 = table2[ids2] * math.sqrt(d_model)
    assert out2.shape == (batch, seq2, d_model)
    assert jnp.allclose(out2, ref2, atol=1e-5, rtol=1e-5), float(
        jnp.max(jnp.abs(out2 - ref2)))

    # Config 3: force the HBM row-gather path (what huge vocabularies take) so
    # it is compiled and exercised at small shapes too.
    out3 = jax.block_until_ready(pallas_embedding(ids2, table2, force_path="hbm"))
    assert jnp.allclose(out3, ref2, atol=1e-5, rtol=1e-5), float(
        jnp.max(jnp.abs(out3 - ref2)))

    print("KERNEL_OK")
</pallas_src>

<mosaic_0001>
module attributes {stable_mosaic.version = 11 : i64} {
  func.func @kernel(%arg0: i32, %arg1: memref<16xi32, #tpu.memory_space<smem>>, %arg2: memref<64x128xf32, #tpu.memory_space<vmem>>, %arg3: memref<16x128xf32, #tpu.memory_space<vmem>>) attributes {dimension_semantics = [#tpu.dimension_semantics<parallel>], iteration_bounds = array<i64: 1>, scalar_prefetch = 1 : i64, scratch_operands = 0 : i64, tpu.core_type = #tpu.core_type<tc>, window_params = [{pipeline_mode = #tpu.pipeline_mode<synchronous>, transform_indices = @transform_0, window_bounds = array<i64: 64, 128>}, {transform_indices = @transform_1, window_bounds = array<i64: 16, 128>}]} {
    %c16_i32 = arith.constant 16 : i32
    %0 = arith.muli %arg0, %c16_i32 : i32
    %c0_i32 = arith.constant 0 : i32
    %c2_i32 = arith.constant 2 : i32
    %1 = arith.addi %c0_i32, %c2_i32 : i32
    %c1_i32 = arith.constant 1 : i32
    scf.for %arg4 = %c0_i32 to %1 step %c1_i32  : i32 {
      %c8_i32 = arith.constant 8 : i32
      %2 = arith.muli %arg4, %c8_i32 : i32
      %3 = tpu.assume_multiple %2, 8 : i32
      %4 = arith.addi %0, %3 : i32
      %c0_i32_1 = arith.constant 0 : i32
      %5 = arith.addi %4, %c0_i32_1 : i32
      %6 = arith.index_cast %5 : i32 to index
      %7 = memref.load %arg1[%6] : memref<16xi32, #tpu.memory_space<smem>>
      %8 = arith.index_cast %7 : i32 to index
      %c0 = arith.constant 0 : index
      %9 = vector.load %arg2[%8, %c0] : memref<64x128xf32, #tpu.memory_space<vmem>>, vector<1x128xf32>
      %10 = arith.addi %0, %3 : i32
      %c1_i32_2 = arith.constant 1 : i32
      %11 = arith.addi %10, %c1_i32_2 : i32
      %12 = arith.index_cast %11 : i32 to index
      %13 = memref.load %arg1[%12] : memref<16xi32, #tpu.memory_space<smem>>
      %14 = arith.index_cast %13 : i32 to index
      %c0_3 = arith.constant 0 : index
      %15 = vector.load %arg2[%14, %c0_3] : memref<64x128xf32, #tpu.memory_space<vmem>>, vector<1x128xf32>
      %16 = arith.addi %0, %3 : i32
      %c2_i32_4 = arith.constant 2 : i32
      %17 = arith.addi %16, %c2_i32_4 : i32
      %18 = arith.index_cast %17 : i32 to index
      %19 = memref.load %arg1[%18] : memref<16xi32, #tpu.memory_space<smem>>
      %20 = arith.index_cast %19 : i32 to index
      %c0_5 = arith.constant 0 : index
      %21 = vector.load %arg2[%20, %c0_5] : memref<64x128xf32, #tpu.memory_space<vmem>>, vector<1x128xf32>
      %22 = arith.addi %0, %3 : i32
      %c3_i32 = arith.constant 3 : i32
      %23 = arith.addi %22, %c3_i32 : i32
      %24 = arith.index_cast %23 : i32 to index
      %25 = memref.load %arg1[%24] : memref<16xi32, #tpu.memory_space<smem>>
      %26 = arith.index_cast %25 : i32 to index
      %c0_6 = arith.constant 0 : index
      %27 = vector.load %arg2[%26, %c0_6] : memref<64x128xf32, #tpu.memory_space<vmem>>, vector<1x128xf32>
      %28 = arith.addi %0, %3 : i32
      %c4_i32 = arith.constant 4 : i32
      %29 = arith.addi %28, %c4_i32 : i32
      %30 = arith.index_cast %29 : i32 to index
      %31 = memref.load %arg1[%30] : memref<16xi32, #tpu.memory_space<smem>>
      %32 = arith.index_cast %31 : i32 to index
      %c0_7 = arith.constant 0 : index
      %33 = vector.load %arg2[%32, %c0_7] : memref<64x128xf32, #tpu.memory_space<vmem>>, vector<1x128xf32>
      %34 = arith.addi %0, %3 : i32
      %c5_i32 = arith.constant 5 : i32
      %35 = arith.addi %34, %c5_i32 : i32
      %36 = arith.index_cast %35 : i32 to index
      %37 = memref.load %arg1[%36] : memref<16xi32, #tpu.memory_space<smem>>
      %38 = arith.index_cast %37 : i32 to index
      %c0_8 = arith.constant 0 : index
      %39 = vector.load %arg2[%38, %c0_8] : memref<64x128xf32, #tpu.memory_space<vmem>>, vector<1x128xf32>
      %40 = arith.addi %0, %3 : i32
      %c6_i32 = arith.constant 6 : i32
      %41 = arith.addi %40, %c6_i32 : i32
      %42 = arith.index_cast %41 : i32 to index
      %43 = memref.load %arg1[%42] : memref<16xi32, #tpu.memory_space<smem>>
      %44 = arith.index_cast %43 : i32 to index
      %c0_9 = arith.constant 0 : index
      %45 = vector.load %arg2[%44, %c0_9] : memref<64x128xf32, #tpu.memory_space<vmem>>, vector<1x128xf32>
      %46 = arith.addi %0, %3 : i32
      %c7_i32 = arith.constant 7 : i32
      %47 = arith.addi %46, %c7_i32 : i32
      %48 = arith.index_cast %47 : i32 to index
      %49 = memref.load %arg1[%48] : memref<16xi32, #tpu.memory_space<smem>>
      %50 = arith.index_cast %49 : i32 to index
      %c0_10 = arith.constant 0 : index
      %51 = vector.load %arg2[%50, %c0_10] : memref<64x128xf32, #tpu.memory_space<vmem>>, vector<1x128xf32>
      %52 = tpu.concatenate %9, %15, %21, %27, %33, %39, %45, %51 in 0 : vector<1x128xf32>, vector<1x128xf32>, vector<1x128xf32>, vector<1x128xf32>, vector<1x128xf32>, vector<1x128xf32>, vector<1x128xf32>, vector<1x128xf32> -> vector<8x128xf32>
      %cst = arith.constant 11.3137083 : f32
      %53 = vector.broadcast %cst : f32 to vector<8x128xf32>
      %54 = arith.mulf %52, %53 : vector<8x128xf32>
      %55 = arith.index_cast %3 : i32 to index
      %c0_11 = arith.constant 0 : index
      %56 = vector.load %arg3[%55, %c0_11] : memref<16x128xf32, #tpu.memory_space<vmem>>, vector<8x128xf32>
      tpu.vector_store %arg3[%55, %c0_11], %54 {strides = array<i32>} : memref<16x128xf32, #tpu.memory_space<vmem>>, vector<8x128xf32>,
    }
    %c2_i32_0 = arith.constant 2 : i32
    return
  }
  func.func @transform_0(%arg0: i32, %arg1: memref<16xi32, #tpu.memory_space<smem>>) -> (i32, i32) {
    %c0_i32 = arith.constant 0 : i32
    %c0_i32_0 = arith.constant 0 : i32
    %c0_i32_1 = arith.constant 0 : i32
    return %c0_i32, %c0_i32_0 : i32, i32
  }
  func.func @transform_1(%arg0: i32, %arg1: memref<16xi32, #tpu.memory_space<smem>>) -> (i32, i32) {
    %c0_i32 = arith.constant 0 : i32
    %c0_i32_0 = arith.constant 0 : i32
    return %arg0, %c0_i32 : i32, i32
  }
}

</mosaic_0001>

<llo_original>
// kernel: tpu_custom_call.1
$region0: #{tpu_custom_call.1}
  #allocation0 [shape = 'u32[]', space=smem, size = 0x4, offset = 0x4, fixed_abs, tag = 'smem constant byte address 0x4 - core index']
  #allocation1 [shape = 'u32[144,128]{1,0:T(1,128)}', space=vmem, size = 0x12000, scoped, tag = 'internal scratch']
  #allocation2 [shape = 's32[1]{0}', space=sflag, size = 0x4, scoped, tag = 'scoped memory for tpu_custom_call.1']
  #allocation3 [shape = 'u8[512]{0}', space=smem, size = 0x200, scoped, tag = 'prefetched SMEM operand 0']
  %s0 = inlined_call_operand.hbm [shape: s32[16], index: 0, kind: input, shape index: {}]
  %s1 = inlined_call_operand.hbm [shape: f32[64,128], index: 1, kind: input, shape index: {}]
  %s2 = inlined_call_operand.hbm [shape: f32[16,128], index: 2, kind: output, shape index: {}]
  %s3 = sld [smem:[#allocation0]]
  $region25: #{tpu_custom_call.1} parent=0
    _
  %s5 = ssub.s32 1, %s3
  %s6 = scalar_select 0, %s5, %s3
  %8 = dma.hbm_to_smem %s0, 16, [#allocation3], [#allocation2]
  %9 = dma.done [#allocation2], 16
  %10 = sfence
  $region1: #{tpu_custom_call.1} parent=0
    #allocation4 [shape = 'u8[32768]{0}', space=vmem, size = 0x8000, scoped, tag = 'input window, operand 1, single buffered']
    #allocation5 [shape = 's32[1]{0}', space=sflag, size = 0x4, scoped, tag = 'scoped memory for tpu_custom_call.1']
    #allocation6 [shape = 's32[1]{0}', space=sflag, size = 0x4, scoped, tag = 'scoped memory for tpu_custom_call.1']
    #allocation7 [shape = 'u8[8192]{0}', space=vmem, size = 0x2000, scoped, tag = 'output window, operand 0, single buffered']
    %11 = vsyncpa [#allocation5], 0
    %12 = vsyncpa [#allocation6], 0
    // Predicated region
    $region2: #{tpu_custom_call.1} parent=1 // pred_check
      _
    $region3: #{tpu_custom_call.1} parent=1 // pred_check_branch
      %14 = sbr.rel (0) target = $region5
    $region4: #{tpu_custom_call.1} parent=1 // pred_region
      %s16 = ssub.s32 1024, 1024
      %17 = vsyncadd [#allocation5], %s16
      %s18 = sshll.u32 [#allocation4], 4
      %s19 = int_to_ptr.vmem [resolvable:$true] %s18
      %24 = dma.hbm_to_vmem [thread:$0]  %s1, 1024, %s19, [#allocation5], 128, 128, 8
    $region5: #{tpu_custom_call.1} parent=1 // pred_fallthru
      _
    // Predicated region
    $region6: #{tpu_custom_call.1} parent=1 // pred_check
      _
    $region7: #{tpu_custom_call.1} parent=1 // pred_check_branch
      %26 = sbr.rel (0) target = $region9
    $region8: #{tpu_custom_call.1} parent=1 // pred_region
      %27 = dma.done [#allocation5], 1024
    $region9: #{tpu_custom_call.1} parent=1 // pred_fallthru
      _
    %s28 = smul.u32 0, 16
    loop: start=0, step=1, limit=2
    $region10: #{tpu_custom_call.1} parent=1 // loop_pre_header
      _
    $region11: #{tpu_custom_call.1} parent=1 // loop_header
      %s30 = sphi 0, %s34
      %p31 = scmp.ge.s32.totalorder %s30, 2
    $region12: #{tpu_custom_call.1} parent=1 // loop_header_branch
      %33 = sbr.rel (%p31) target = $region16
    $region13: #{tpu_custom_call.1} parent=1 // loop_body
      %s35 = smul.u32 %s30, 8
      %s36 = sadd.s32 %s28, %s35
      %s37 = sld [smem:[#allocation3 + %s36]]
      %s38 = scalar_lea.vmem [#allocation4], %s37
      %v39 = vld [vmem:[%s38] sm:$0x1]
      %s40 = sadd.s32 %s36, 1
      %s41 = sld [smem:[#allocation3 + %s40]]
      %s42 = scalar_lea.vmem [#allocation4], %s41
      %v43 = vld [vmem:[%s42] sm:$0x1]
      %s44 = sadd.s32 %s36, 2
      %s45 = sld [smem:[#allocation3 + %s44]]
      %s46 = scalar_lea.vmem [#allocation4], %s45
      %v47 = vld [vmem:[%s46] sm:$0x1]
      %s48 = sadd.s32 %s36, 3
      %s49 = sld [smem:[#allocation3 + %s48]]
      %s50 = scalar_lea.vmem [#allocation4], %s49
      %v51 = vld [vmem:[%s50] sm:$0x1]
      %s52 = sadd.s32 %s36, 4
      %s53 = sld [smem:[#allocation3 + %s52]]
      %s54 = scalar_lea.vmem [#allocation4], %s53
      %v55 = vld [vmem:[%s54] sm:$0x1]
      %s56 = sadd.s32 %s36, 5
      %s57 = sld [smem:[#allocation3 + %s56]]
      %s58 = scalar_lea.vmem [#allocation4], %s57
      %v59 = vld [vmem:[%s58] sm:$0x1]
      %s60 = sadd.s32 %s36, 6
      %s61 = sld [smem:[#allocation3 + %s60]]
      %s62 = scalar_lea.vmem [#allocation4], %s61
      %v63 = vld [vmem:[%s62] sm:$0x1]
      %s64 = sadd.s32 %s36, 7
      %s65 = sld [smem:[#allocation3 + %s64]]
      %s66 = scalar_lea.vmem [#allocation4], %s65
      %v67 = vld [vmem:[%s66] sm:$0x1]
      %v69 = vrot.slane %v43, 7
      %v72 = vrot.slane %v47, 6
      %v75 = vrot.slane %v51, 5
      %v78 = vrot.slane %v55, 4
      %v81 = vrot.slane %v59, 3
      %v84 = vrot.slane %v63, 2
      %v87 = vrot.slane %v67, 1
      %vm89 = vcmask 1040384
      %v90 = vsel %vm89, %v39, %v69
      %vm91 = vcmask 1041408
      %v92 = vsel %vm91, %v90, %v72
      %vm93 = vcmask 1042432
      %v94 = vsel %vm93, %v92, %v75
      %vm95 = vcmask 1043456
      %v96 = vsel %vm95, %v94, %v78
      %vm97 = vcmask 1044480
      %v98 = vsel %vm97, %v96, %v81
      %vm99 = vcmask 1045504
      %v100 = vsel %vm99, %v98, %v84
      %vm101 = vcmask 1046528
      %v102 = vsel %vm101, %v100, %v87
      %v103 = vmul.f32 %v102, 11.313708
      %s104 = scalar_lea.vmem [#allocation7], %s35
      %105 = vst [vmem:[%s104] sm:$0xff] %v103
    $region14: #{tpu_custom_call.1} parent=1 // loop_footer
      %s34 = sadd.s32 1, %s30
    $region15: #{tpu_custom_call.1} parent=1 // loop_footer_branch
      %29 = sbr.rel target = $region11
    $region16: #{tpu_custom_call.1} parent=1 // loop_exit
      _
    // Predicated region
    $region17: #{tpu_custom_call.1} parent=1 // pred_check
      _
    $region18: #{tpu_custom_call.1} parent=1 // pred_check_branch
      %107 = sbr.rel (0) target = $region20
    $region19: #{tpu_custom_call.1} parent=1 // pred_region
      %s109 = ssub.s32 256, 256
      %110 = vsyncadd [#allocation6], %s109
      %s111 = sshll.u32 [#allocation7], 4
      %s112 = int_to_ptr.vmem [resolvable:$true] %s111
      %117 = dma.vmem_to_hbm [thread:$0]  %s112, 256, %s2, [#allocation6], 128, 128, 8
    $region20: #{tpu_custom_call.1} parent=1 // pred_fallthru
      _
    // Predicated region
    $region21: #{tpu_custom_call.1} parent=1 // pred_check
      _
    $region22: #{tpu_custom_call.1} parent=1 // pred_check_branch
      %119 = sbr.rel (0) target = $region24
    $region23: #{tpu_custom_call.1} parent=1 // pred_region
      %120 = dma.done [#allocation6], 256
    $region24: #{tpu_custom_call.1} parent=1 // pred_fallthru
      _
    %121 = vsyncpa [#allocation5], 1
    %122 = vsyncpa [#allocation6], 1

</llo_original>
